<compile_context>
chip_gen: v7x
topology: tpu7x:2x2x1
jax: 0.10.0
libtpu: 0.0.40
codegen_flags: <defaults>
</compile_context>

<pallas_src>
import functools

import jax
import jax.numpy as jnp
from jax import lax
from jax.experimental import pallas as pl
from jax.experimental.pallas import tpu as pltpu

BN_EPS = 1e-5

_TN_CAP = 512
_TK_CAP = 512


def _round_up(x, m):
    return ((x + m - 1) // m) * m


def _choose_tile(dim_p, cap):
    """Largest multiple of 128 that divides dim_p and is <= cap (>= 128)."""
    best = 128
    t = 128
    limit = min(dim_p, max(cap, 128))
    while t <= limit:
        if dim_p % t == 0:
            best = t
        t += 128
    return best


def _physical_vmem_bytes():
    try:
        return int(pltpu.get_tpu_info().vmem_capacity_bytes)
    except Exception:
        return 64 * 1024 * 1024  # conservative fallback (v7x per-TC VMEM)


def fc_block_kernel(x_ref, w_ref, gamma_ref, beta_ref, o_ref, *scratch,
                    inv_b, tk, x_resident):
    k = pl.program_id(1)
    # f32 outputs accumulate directly into the resident output block (its
    # block index is constant across k); narrower outputs use the f32 scratch.
    acc_ref = scratch[0] if scratch else o_ref

    @pl.when(k == 0)
    def _():
        acc_ref[...] = jnp.zeros_like(acc_ref)

    if x_resident:
        start = pl.multiple_of(k * tk, 128)
        x_tile = x_ref[:, pl.ds(start, tk)]
    else:
        x_tile = x_ref[...]

    # Linear accumulation: acc += x_tile @ W_tile (f32 accumulator on MXU).
    acc_ref[...] += jnp.dot(x_tile, w_ref[...],
                            preferred_element_type=jnp.float32)

    @pl.when(k == pl.num_programs(1) - 1)
    def _():
        # Epilogue: BatchNorm1d (training-mode, biased variance) + ReLU.
        # NOTE: the Linear bias is intentionally omitted -- it is exactly
        # cancelled by the BN mean subtraction.
        y = acc_ref[...]                                         # (B, TN) f32
        s = jnp.sum(y, axis=0, keepdims=True)                    # (1, TN)
        ss = jnp.sum(y * y, axis=0, keepdims=True)               # (1, TN)
        mean = s * inv_b
        var = jnp.maximum(ss * inv_b - mean * mean, 0.0)

        scale = gamma_ref[...].astype(jnp.float32) * lax.rsqrt(var + BN_EPS)
        shift = beta_ref[...].astype(jnp.float32) - mean * scale

        o_ref[...] = jnp.maximum(y * scale + shift, 0.0).astype(o_ref.dtype)


@functools.partial(jax.jit, static_argnames=("compute_dtype",))
def fc_block_forward(x, w_t, gamma, beta, compute_dtype=None):
    # Optional bf16 MXU operands (v6e/v7x compute-bound shapes); accumulation
    # stays f32 in the kernel.
    if compute_dtype is not None:
        x = x.astype(compute_dtype)
        w_t = w_t.astype(compute_dtype)

    B, C_in = x.shape
    C_out = w_t.shape[1]
    out_dtype = x.dtype
    isz = jnp.dtype(x.dtype).itemsize
    osz = jnp.dtype(out_dtype).itemsize

    # Pad channel dims only to the 128-lane boundary (exact: zero rows/cols
    # add nothing to the matmul; padded features are sliced off at the end).
    c_in_p = _round_up(C_in, 128)
    c_out_p = _round_up(C_out, 128)
    if c_in_p != C_in:
        x = jnp.pad(x, ((0, 0), (0, c_in_p - C_in)))
        w_t = jnp.pad(w_t, ((0, c_in_p - C_in), (0, 0)))
    if c_out_p != C_out:
        w_t = jnp.pad(w_t, ((0, 0), (0, c_out_p - C_out)))
        gamma = jnp.pad(gamma, ((0, 0), (0, c_out_p - C_out)))
        beta = jnp.pad(beta, ((0, 0), (0, c_out_p - C_out)))

    # --- VMEM budget & tile selection ------------------------------------
    phys_vmem = _physical_vmem_bytes()
    budget = min(int(phys_vmem * 0.75), 96 * 1024 * 1024)

    needs_scratch = out_dtype != jnp.float32

    # Keep x fully VMEM-resident (fetched once) if it fits half the budget;
    # otherwise stream (B, tk) slabs (re-read once per C_out tile).
    x_resident = (2 * B * c_in_p * isz) <= budget // 2

    def footprint(tn, tk):
        x_b = 2 * B * c_in_p * isz if x_resident else 2 * B * tk * isz
        w_b = 2 * tk * tn * isz          # weight tile, double-buffered
        o_b = 2 * B * tn * osz           # output block, double-buffered
        a_b = B * tn * 4 if needs_scratch else 0
        p_b = 2 * 2 * tn * 4             # gamma/beta tiles
        return x_b + w_b + o_b + a_b + p_b

    tn = _choose_tile(c_out_p, _TN_CAP)
    tk = _choose_tile(c_in_p, _TK_CAP)
    # Prefer >= 2 output tiles so the "parallel" axis can shard across the
    # two v7x TensorCores (cheap elsewhere: one extra ~0.35us grid step).
    if c_out_p // tn < 2 and c_out_p >= 256:
        tn = _choose_tile(c_out_p, c_out_p // 2)
    # Shrink tiles until the per-step working set fits the budget.
    while footprint(tn, tk) > budget and (tn > 128 or tk > 128):
        if tk >= tn and tk > 128:
            tk = _choose_tile(c_in_p, tk // 2)
        elif tn > 128:
            tn = _choose_tile(c_out_p, tn // 2)
        else:
            break
    # TODO(synk): for very large B the (B, tn) output/accumulator block alone
    # can exceed VMEM; a B-tiled two-pass (partial sum / sum-of-squares)
    # variant would be needed there. B is kept whole here so BN batch stats
    # are computed in one pass.

    grid = (c_out_p // tn, c_in_p // tk)

    if x_resident:
        x_spec = pl.BlockSpec((B, c_in_p), lambda j, k: (0, 0))
    else:
        x_spec = pl.BlockSpec((B, tk), lambda j, k: (0, k))

    kernel = functools.partial(fc_block_kernel, inv_b=1.0 / B, tk=tk,
                               x_resident=x_resident)

    scratch_shapes = ([pltpu.VMEM((B, tn), jnp.float32)]
                      if needs_scratch else [])

    vmem_limit = int(min(max(footprint(tn, tk) + (4 << 20), 32 << 20),
                         int(phys_vmem * 0.9)))

    cost = pl.CostEstimate(
        flops=2 * B * c_in_p * c_out_p,
        transcendentals=c_out_p,
        bytes_accessed=(B * c_in_p * isz + c_in_p * c_out_p * isz
                        + B * c_out_p * osz + 4 * c_out_p * 4),
    )

    out = pl.pallas_call(
        kernel,
        out_shape=jax.ShapeDtypeStruct((B, c_out_p), out_dtype),
        grid_spec=pltpu.PrefetchScalarGridSpec(
            num_scalar_prefetch=0,
            grid=grid,
            in_specs=[
                x_spec,                                          # x
                pl.BlockSpec((tk, tn), lambda j, k: (k, j)),     # W^T tile
                pl.BlockSpec((1, tn), lambda j, k: (0, j)),      # gamma
                pl.BlockSpec((1, tn), lambda j, k: (0, j)),      # beta
            ],
            out_specs=pl.BlockSpec((B, tn), lambda j, k: (0, j)),
            scratch_shapes=scratch_shapes,
        ),
        compiler_params=pltpu.CompilerParams(
            dimension_semantics=("parallel", "arbitrary"),
            vmem_limit_bytes=vmem_limit),
        cost_estimate=cost,
    )(x, w_t, gamma, beta)

    return out[:, :C_out]


def reference_forward(x, w_t, b, gamma, beta):
    # PyTorch semantics: Linear (with bias) -> BatchNorm1d (training-mode
    # batch stats, biased variance) -> ReLU.
    y = x.astype(jnp.float32) @ w_t.astype(jnp.float32) + b
    mean = jnp.mean(y, axis=0, keepdims=True)
    var = jnp.mean((y - mean) ** 2, axis=0, keepdims=True)
    y = gamma * ((y - mean) * lax.rsqrt(var + BN_EPS)) + beta
    return jnp.maximum(y, 0.0)


if __name__ == "__main__":
    B, C_in, C_out = 8, 32, 64

    key = jax.random.PRNGKey(0)
    k_x, k_w, k_b = jax.random.split(key, 3)

    # Deterministic parameter init (mimics nn.Linear's uniform fan-in init).
    bound = 1.0 / (C_in ** 0.5)
    x = jax.random.normal(k_x, (B, C_in), dtype=jnp.float32)
    w = jax.random.uniform(k_w, (C_out, C_in), jnp.float32, -bound, bound)
    b = jax.random.uniform(k_b, (1, C_out), jnp.float32, -bound, bound)
    # BatchNorm1d affine params at default init.
    gamma = jnp.ones((1, C_out), jnp.float32)
    beta = jnp.zeros((1, C_out), jnp.float32)

    w_t = w.T  # (C_in, C_out) for the kernel

    # The kernel omits the Linear bias: BatchNorm's mean subtraction cancels
    # it exactly, so the output matches the biased reference.
    out = fc_block_forward(x, w_t, gamma, beta)
    jax.block_until_ready(out)

    ref = reference_forward(x, w_t, b, gamma, beta)
    assert out.shape == (B, C_out)
    assert jnp.allclose(out, ref, atol=1e-3, rtol=1e-3), "mismatch vs reference"

    # TODO(synk): BatchNorm running-stats update (eval mode) not modeled;
    # kernel implements PyTorch training-mode batch statistics like the spec's
    # default forward.
    print("KERNEL_OK")
</pallas_src>

<mosaic_0001>
module attributes {stable_mosaic.version = 11 : i64} {
  func.func @fc_block_kernel(%arg0: i32, %arg1: i32, %arg2: memref<8x128xf32, #tpu.memory_space<vmem>>, %arg3: memref<128x128xf32, #tpu.memory_space<vmem>>, %arg4: memref<1x128xf32, #tpu.memory_space<vmem>>, %arg5: memref<1x128xf32, #tpu.memory_space<vmem>>, %arg6: memref<8x128xf32, #tpu.memory_space<vmem>>) attributes {dimension_semantics = [#tpu.dimension_semantics<parallel>, #tpu.dimension_semantics<arbitrary>], iteration_bounds = array<i64: 1, 1>, scalar_prefetch = 0 : i64, scratch_operands = 0 : i64, tpu.core_type = #tpu.core_type<tc>, window_params = [{pipeline_mode = #tpu.pipeline_mode<synchronous>, transform_indices = @transform_0, window_bounds = array<i64: 8, 128>}, {transform_indices = @transform_1, window_bounds = array<i64: 128, 128>}, {transform_indices = @transform_2, window_bounds = array<i64: 1, 128>}, {transform_indices = @transform_3, window_bounds = array<i64: 1, 128>}, {transform_indices = @transform_4, window_bounds = array<i64: 8, 128>}]} {
    %c0_i32 = arith.constant 0 : i32
    %0 = arith.cmpi eq, %arg1, %c0_i32 : i32
    %1 = arith.extui %0 : i1 to i32
    %c0_i32_0 = arith.constant 0 : i32
    %2 = arith.cmpi ne, %1, %c0_i32_0 : i32
    scf.if %2 {
      %cst_9 = arith.constant 0.000000e+00 : f32
      %15 = vector.broadcast %cst_9 : f32 to vector<8x128xf32>
      %c0_10 = arith.constant 0 : index
      %c0_11 = arith.constant 0 : index
      %16 = vector.load %arg6[%c0_10, %c0_11] : memref<8x128xf32, #tpu.memory_space<vmem>>, vector<8x128xf32>
      tpu.vector_store %arg6[%c0_10, %c0_11], %15 {strides = array<i32>} : memref<8x128xf32, #tpu.memory_space<vmem>>, vector<8x128xf32>,
    } else {
    }
    %c128_i32 = arith.constant 128 : i32
    %3 = arith.muli %arg1, %c128_i32 : i32
    %4 = tpu.assume_multiple %3, 128 : i32
    %c0 = arith.constant 0 : index
    %5 = arith.index_cast %4 : i32 to index
    %6 = vector.load %arg2[%c0, %5] : memref<8x128xf32, #tpu.memory_space<vmem>>, vector<8x128xf32>
    %c0_1 = arith.constant 0 : index
    %c0_2 = arith.constant 0 : index
    %7 = vector.load %arg6[%c0_1, %c0_2] : memref<8x128xf32, #tpu.memory_space<vmem>>, vector<8x128xf32>
    %c0_3 = arith.constant 0 : index
    %c0_4 = arith.constant 0 : index
    %8 = vector.load %arg3[%c0_3, %c0_4] : memref<128x128xf32, #tpu.memory_space<vmem>>, vector<128x128xf32>
    %cst = arith.constant dense<0.000000e+00> : vector<8x128xf32>
    %9 = tpu.matmul %6, %8, %cst {dimension_numbers = #tpu.dot_dimension_numbers<[1], [0], [0], [1], [0, 0, 1, 1], [], []>} : vector<8x128xf32>, vector<128x128xf32>, vector<8x128xf32> -> vector<8x128xf32>
    %10 = arith.addf %7, %9 : vector<8x128xf32>
    %c0_5 = arith.constant 0 : index
    %c0_6 = arith.constant 0 : index
    %11 = vector.load %arg6[%c0_5, %c0_6] : memref<8x128xf32, #tpu.memory_space<vmem>>, vector<8x128xf32>
    tpu.vector_store %arg6[%c0_5, %c0_6], %10 {strides = array<i32>} : memref<8x128xf32, #tpu.memory_space<vmem>>, vector<8x128xf32>,
    %c0_i32_7 = arith.constant 0 : i32
    %12 = arith.cmpi eq, %arg1, %c0_i32_7 : i32
    %13 = arith.extui %12 : i1 to i32
    %c0_i32_8 = arith.constant 0 : i32
    %14 = arith.cmpi ne, %13, %c0_i32_8 : i32
    scf.if %14 {
      %c0_9 = arith.constant 0 : index
      %c0_10 = arith.constant 0 : index
      %15 = vector.load %arg6[%c0_9, %c0_10] : memref<8x128xf32, #tpu.memory_space<vmem>>, vector<8x128xf32>
      %cst_11 = arith.constant dense<0.000000e+00> : vector<128xf32>
      %16 = vector.multi_reduction <add>, %15, %cst_11 [0] : vector<8x128xf32> to vector<128xf32>
      %17 = vector.shape_cast %16 : vector<128xf32> to vector<1x128xf32>
      %18 = arith.mulf %15, %15 : vector<8x128xf32>
      %cst_12 = arith.constant dense<0.000000e+00> : vector<128xf32>
      %19 = vector.multi_reduction <add>, %18, %cst_12 [0] : vector<8x128xf32> to vector<128xf32>
      %20 = vector.shape_cast %19 : vector<128xf32> to vector<1x128xf32>
      %cst_13 = arith.constant 1.250000e-01 : f32
      %21 = vector.broadcast %cst_13 : f32 to vector<1x128xf32>
      %22 = arith.mulf %17, %21 : vector<1x128xf32>
      %cst_14 = arith.constant 1.250000e-01 : f32
      %23 = vector.broadcast %cst_14 : f32 to vector<1x128xf32>
      %24 = arith.mulf %20, %23 : vector<1x128xf32>
      %25 = arith.mulf %22, %22 : vector<1x128xf32>
      %26 = arith.subf %24, %25 : vector<1x128xf32>
      %cst_15 = arith.constant 0.000000e+00 : f32
      %27 = vector.broadcast %cst_15 : f32 to vector<1x128xf32>
      %28 = arith.maximumf %26, %27 : vector<1x128xf32>
      %c0_16 = arith.constant 0 : index
      %c0_17 = arith.constant 0 : index
      %29 = vector.load %arg4[%c0_16, %c0_17] : memref<1x128xf32, #tpu.memory_space<vmem>>, vector<1x128xf32>
      %cst_18 = arith.constant 9.99999974E-6 : f32
      %30 = vector.broadcast %cst_18 : f32 to vector<1x128xf32>
      %31 = arith.addf %28, %30 : vector<1x128xf32>
      %32 = math.rsqrt %31 : vector<1x128xf32>
      %33 = arith.mulf %29, %32 : vector<1x128xf32>
      %c0_19 = arith.constant 0 : index
      %c0_20 = arith.constant 0 : index
      %34 = vector.load %arg5[%c0_19, %c0_20] : memref<1x128xf32, #tpu.memory_space<vmem>>, vector<1x128xf32>
      %35 = arith.mulf %22, %33 : vector<1x128xf32>
      %36 = arith.subf %34, %35 : vector<1x128xf32>
      %37 = vector.broadcast %33 : vector<1x128xf32> to vector<8x128xf32>
      %38 = arith.mulf %15, %37 : vector<8x128xf32>
      %39 = vector.broadcast %36 : vector<1x128xf32> to vector<8x128xf32>
      %40 = arith.addf %38, %39 : vector<8x128xf32>
      %cst_21 = arith.constant 0.000000e+00 : f32
      %41 = vector.broadcast %cst_21 : f32 to vector<8x128xf32>
      %42 = arith.maximumf %40, %41 : vector<8x128xf32>
      %c0_22 = arith.constant 0 : index
      %c0_23 = arith.constant 0 : index
      %43 = vector.load %arg6[%c0_22, %c0_23] : memref<8x128xf32, #tpu.memory_space<vmem>>, vector<8x128xf32>
      tpu.vector_store %arg6[%c0_22, %c0_23], %42 {strides = array<i32>} : memref<8x128xf32, #tpu.memory_space<vmem>>, vector<8x128xf32>,
    } else {
    }
    return
  }
  func.func @transform_0(%arg0: i32, %arg1: i32) -> (i32, i32) {
    %c0_i32 = arith.constant 0 : i32
    %c0_i32_0 = arith.constant 0 : i32
    %c0_i32_1 = arith.constant 0 : i32
    return %c0_i32, %c0_i32_0 : i32, i32
  }
  func.func @transform_1(%arg0: i32, %arg1: i32) -> (i32, i32) {
    %c0_i32 = arith.constant 0 : i32
    return %arg1, %arg0 : i32, i32
  }
  func.func @transform_2(%arg0: i32, %arg1: i32) -> (i32, i32) {
    %c0_i32 = arith.constant 0 : i32
    %c0_i32_0 = arith.constant 0 : i32
    return %c0_i32, %arg0 : i32, i32
  }
  func.func @transform_3(%arg0: i32, %arg1: i32) -> (i32, i32) {
    %c0_i32 = arith.constant 0 : i32
    %c0_i32_0 = arith.constant 0 : i32
    return %c0_i32, %arg0 : i32, i32
  }
  func.func @transform_4(%arg0: i32, %arg1: i32) -> (i32, i32) {
    %c0_i32 = arith.constant 0 : i32
    %c0_i32_0 = arith.constant 0 : i32
    return %c0_i32, %arg0 : i32, i32
  }
}

</mosaic_0001>

<llo_original>
// kernel: fc_block_forward.1
$region0: #{fc_block_forward.1}
  #allocation0 [shape = 'u32[]', space=smem, size = 0x4, offset = 0x4, fixed_abs, tag = 'smem constant byte address 0x4 - core index']
  #allocation1 [shape = 'u32[144,128]{1,0:T(1,128)}', space=vmem, size = 0x12000, scoped, tag = 'internal scratch']
  %s0 = inlined_call_operand.vmem [shape: f32[8,128], index: 0, kind: input, shape index: {}]
  %s1 = inlined_call_operand.vmem [shape: f32[128,128], index: 1, kind: input, shape index: {}]
  %s2 = inlined_call_operand.vmem [shape: f32[1,128], index: 2, kind: input, shape index: {}]
  %s3 = inlined_call_operand.vmem [shape: f32[1,128], index: 3, kind: input, shape index: {}]
  %s4 = inlined_call_operand.hbm [shape: f32[8,128], index: 4, kind: output, shape index: {}]
  %s5 = sld [smem:[#allocation0]]
  $region34: #{fc_block_forward.1} parent=0
    _
  %s7 = ssub.s32 1, %s5
  %s8 = scalar_select 0, %s7, %s5
  $region1: #{fc_block_forward.1} parent=0
    #allocation2 [shape = 'u8[4096]{0}', space=vmem, size = 0x1000, scoped, tag = 'output window, operand 0, single buffered']
    #allocation3 [shape = 's32[1]{0}', space=sflag, size = 0x4, scoped, tag = 'scoped memory for fc_block_forward.1']
    %9 = vsyncpa [#allocation3], 0
    // Predicated region
    $region2: #{fc_block_forward.1} parent=1 // pred_check
      _
    $region3: #{fc_block_forward.1} parent=1 // pred_check_branch
      %11 = sbr.rel (0) target = $region5
    $region4: #{fc_block_forward.1} parent=1 // pred_region
      _
    $region5: #{fc_block_forward.1} parent=1 // pred_fallthru
      _
    // Predicated region
    $region6: #{fc_block_forward.1} parent=1 // pred_check
      _
    $region7: #{fc_block_forward.1} parent=1 // pred_check_branch
      %13 = sbr.rel (0) target = $region9
    $region8: #{fc_block_forward.1} parent=1 // pred_region
      _
    $region9: #{fc_block_forward.1} parent=1 // pred_fallthru
      _
    // Predicated region
    $region10: #{fc_block_forward.1} parent=1 // pred_check
      _
    $region11: #{fc_block_forward.1} parent=1 // pred_check_branch
      %15 = sbr.rel (0) target = $region13
    $region12: #{fc_block_forward.1} parent=1 // pred_region
      _
    $region13: #{fc_block_forward.1} parent=1 // pred_fallthru
      _
    // Predicated region
    $region14: #{fc_block_forward.1} parent=1 // pred_check
      _
    $region15: #{fc_block_forward.1} parent=1 // pred_check_branch
      %17 = sbr.rel (0) target = $region17
    $region16: #{fc_block_forward.1} parent=1 // pred_region
      _
    $region17: #{fc_block_forward.1} parent=1 // pred_fallthru
      _
    %p18 = scmp.eq.s32.totalorder 0, 0
    // Predicated region
    $region18: #{fc_block_forward.1} parent=1 // pred_check
      %p19 = pneg %p18
    $region19: #{fc_block_forward.1} parent=1 // pred_check_branch
      %21 = sbr.rel (%p19) target = $region21
    $region20: #{fc_block_forward.1} parent=1 // pred_region
      %22 = vst [vmem:[#allocation2] sm:$0xff] 0.0
    $region21: #{fc_block_forward.1} parent=1 // pred_fallthru
      _
    %s23 = smul.u32 0, 128
    %s24 = sshra.s32 %s23, 7
    %s25 = sand.u32 %s23, 127
    %s26 = scalar_lea.vmem %s0, %s24
    %v27 = vld [vmem:[%s26] sm:$0xff]
    %v28 = vld [vmem:[#allocation2] sm:$0xff]
    %v29 = vld [vmem:[%s1] sm:$0xff]
    %v30 = vld [vmem:[%s1 + $0x8] sm:$0xff]
    %v31 = vld [vmem:[%s1 + $0x10] sm:$0xff]
    %v32 = vld [vmem:[%s1 + $0x18] sm:$0xff]
    %v33 = vld [vmem:[%s1 + $0x20] sm:$0xff]
    %v34 = vld [vmem:[%s1 + $0x28] sm:$0xff]
    %v35 = vld [vmem:[%s1 + $0x30] sm:$0xff]
    %v36 = vld [vmem:[%s1 + $0x38] sm:$0xff]
    %v37 = vld [vmem:[%s1 + $0x40] sm:$0xff]
    %v38 = vld [vmem:[%s1 + $0x48] sm:$0xff]
    %v39 = vld [vmem:[%s1 + $0x50] sm:$0xff]
    %v40 = vld [vmem:[%s1 + $0x58] sm:$0xff]
    %v41 = vld [vmem:[%s1 + $0x60] sm:$0xff]
    %v42 = vld [vmem:[%s1 + $0x68] sm:$0xff]
    %v43 = vld [vmem:[%s1 + $0x70] sm:$0xff]
    %v44 = vld [vmem:[%s1 + $0x78] sm:$0xff]
    %45 = vmatprep.subr.mxu0 0.0
    %46 = vmatpush1.msra.mxu0 %v29
    %47 = vmatprep.subr.mxu0 0.0
    %48 = vmatpush1.msra.mxu0 %v30
    %49 = vmatprep.subr.mxu0 0.0
    %50 = vmatpush1.msra.mxu0 %v31
    %51 = vmatprep.subr.mxu0 0.0
    %52 = vmatpush1.msra.mxu0 %v32
    %53 = vmatprep.subr.mxu0 0.0
    %54 = vmatpush1.msra.mxu0 %v33
    %55 = vmatprep.subr.mxu0 0.0
    %56 = vmatpush1.msra.mxu0 %v34
    %57 = vmatprep.subr.mxu0 0.0
    %58 = vmatpush1.msra.mxu0 %v35
    %59 = vmatprep.subr.mxu0 0.0
    %60 = vmatpush1.msra.mxu0 %v36
    %61 = vmatprep.subr.mxu0 0.0
    %62 = vmatpush1.msra.mxu0 %v37
    %63 = vmatprep.subr.mxu0 0.0
    %64 = vmatpush1.msra.mxu0 %v38
    %65 = vmatprep.subr.mxu0 0.0
    %66 = vmatpush1.msra.mxu0 %v39
    %67 = vmatprep.subr.mxu0 0.0
    %68 = vmatpush1.msra.mxu0 %v40
    %69 = vmatprep.subr.mxu0 0.0
    %70 = vmatpush1.msra.mxu0 %v41
    %71 = vmatprep.subr.mxu0 0.0
    %72 = vmatpush1.msra.mxu0 %v42
    %73 = vmatprep.subr.mxu0 0.0
    %74 = vmatpush1.msra.mxu0 %v43
    %75 = vmatprep.subr.mxu0 0.0
    %76 = vmatpush1.msra.mxu0 %v44
    %77 = vmatprep.subr.mxu0 0.0
    %78 = vmatpush1.msra.mxu0 0.0
    %79 = vmatprep.subr.mxu0 0.0
    %80 = vmatpush1.msra.mxu0 0.0
    %81 = vmatprep.subr.mxu0 0.0
    %82 = vmatpush1.msra.mxu0 0.0
    %83 = vmatprep.subr.mxu0 0.0
    %84 = vmatpush1.msra.mxu0 0.0
    %85 = vmatprep.subr.mxu0 0.0
    %86 = vmatpush1.msra.mxu0 0.0
    %87 = vmatprep.subr.mxu0 0.0
    %88 = vmatpush1.msra.mxu0 0.0
    %89 = vmatprep.subr.mxu0 0.0
    %90 = vmatpush1.msra.mxu0 0.0
    %91 = vmatprep.subr.mxu0 0.0
    %92 = vmatpush1.msra.mxu0 0.0
    %93 = vmatprep.subr.mxu0 0.0
    %94 = vmatpush1.msra.mxu0 0.0
    %95 = vmatprep.subr.mxu0 0.0
    %96 = vmatpush1.msra.mxu0 0.0
    %97 = vmatprep.subr.mxu0 0.0
    %98 = vmatpush1.msra.mxu0 0.0
    %99 = vmatprep.subr.mxu0 0.0
    %100 = vmatpush1.msra.mxu0 0.0
    %101 = vmatprep.subr.mxu0 0.0
    %102 = vmatpush1.msra.mxu0 0.0
    %103 = vmatprep.subr.mxu0 0.0
    %104 = vmatpush1.msra.mxu0 0.0
    %105 = vmatprep.subr.mxu0 0.0
    %106 = vmatpush1.msra.mxu0 0.0
    %107 = vmatprep.subr.mxu0 0.0
    %108 = vmatpush1.msra.mxu0 0.0
    %109 = vmatprep.mubr.f32.mxu0 0.0
    %110 = vmatmul.mubr.f32.gmra.mrb[0].mxu0 %v27
    %v111 = vpop.f32.mrb[0].mxu0
    %v112 = vadd.f32 0.0, %v111
    %v113 = vpop.f32.mrb[0].mxu0
    %114 = vdwg.mxu0
    %v115 = vadd.f32 %v28, %v112
    %116 = vst [vmem:[#allocation2] sm:$0xff] %v115
    // Predicated region
    $region22: #{fc_block_forward.1} parent=1 // pred_check
      %p117 = pneg %p18
    $region23: #{fc_block_forward.1} parent=1 // pred_check_branch
      %119 = sbr.rel (%p117) target = $region25
    $region24: #{fc_block_forward.1} parent=1 // pred_region
      %v120 = vld [vmem:[#allocation2] sm:$0xff]
      %v121 = vrot.slane %v120, 4
      %v122 = vadd.f32 %v120, %v121
      %v123 = vrot.slane %v122, 2
      %v124 = vadd.f32 %v122, %v123
      %v125 = vrot.slane %v124, 1
      %v126 = vadd.f32 %v124, %v125
      %v127 = vmul.f32 %v120, %v120
      %v128 = vrot.slane %v127, 4
      %v129 = vadd.f32 %v127, %v128
      %v130 = vrot.slane %v129, 2
      %v131 = vadd.f32 %v129, %v130
      %v132 = vrot.slane %v131, 1
      %v133 = vadd.f32 %v131, %v132
      %v134 = vmul.f32 %v126, 0.125
      %v135 = vmul.f32 %v133, 0.125
      %v136 = vmul.f32 %v134, %v134
      %v137 = vsub.f32 %v135, %v136
      %v138 = vmax.f32 %v137, 0.0
      %v139 = vld [vmem:[%s2] sm:$0x1]
      %v140 = vadd.f32 %v138, 1e-05
      %v141 = vrsqrt.pop %v140
      %v142 = vmul.f32 %v139, %v141
      %v143 = vld [vmem:[%s3] sm:$0x1]
      %v144 = vmul.f32 %v134, %v142
      %v145 = vsub.f32 %v143, %v144
      %v147 = vlaneseq
      %v148 = vshrl.u32 %v147, 7
      %v149 = vsub.s32 0, %v148
      %v150 = vrot.slane %v142, %v149
      %v152 = vmul.f32 %v120, %v150
      %v154 = vlaneseq
      %v155 = vshrl.u32 %v154, 7
      %v156 = vsub.s32 0, %v155
      %v157 = vrot.slane %v145, %v156
      %v159 = vadd.f32 %v152, %v157
      %v160 = vmax.f32 %v159, 0.0
      %161 = vst [vmem:[#allocation2] sm:$0xff] %v160
    $region25: #{fc_block_forward.1} parent=1 // pred_fallthru
      _
    // Predicated region
    $region26: #{fc_block_forward.1} parent=1 // pred_check
      _
    $region27: #{fc_block_forward.1} parent=1 // pred_check_branch
      %163 = sbr.rel (0) target = $region29
    $region28: #{fc_block_forward.1} parent=1 // pred_region
      %s165 = ssub.s32 128, 128
      %166 = vsyncadd [#allocation3], %s165
      %s168 = sshll.u32 [#allocation2], 4
      %s169 = int_to_ptr.vmem [resolvable:$true] %s168
      %171 = dma.vmem_to_hbm [thread:$0]  %s169, 128, %s4, [#allocation3]
    $region29: #{fc_block_forward.1} parent=1 // pred_fallthru
      _
    // Predicated region
    $region30: #{fc_block_forward.1} parent=1 // pred_check
      _
    $region31: #{fc_block_forward.1} parent=1 // pred_check_branch
      %173 = sbr.rel (0) target = $region33
    $region32: #{fc_block_forward.1} parent=1 // pred_region
      %174 = dma.done [#allocation3], 128
    $region33: #{fc_block_forward.1} parent=1 // pred_fallthru
      _
    %175 = vsyncpa [#allocation3], 1

</llo_original>
